<compile_context>
chip_gen: v5e
topology: v5e:2x2
jax: 0.10.0
libtpu: 0.0.40
codegen_flags: <defaults>
</compile_context>

<pallas_src>
import functools

import jax
import jax.numpy as jnp
from jax.experimental import pallas as pl
from jax.experimental.pallas import tpu as pltpu


def _leaky_relu(v):
    return jnp.where(v >= 0, v, 0.2 * v)


def _conv_block_kernel(x_ref, halo_ref, w_ref, o_ref, xstk_ref, *, dilation, c_in):
    # x_ref   : (1, C_in, TL)        bf16  raw input tile (not yet activated)
    # halo_ref: (1, 1, C_in, 2*d)    bf16  [left | right] halo, pre-activated, zero at edges
    # w_ref   : (C_out, 3*C_in + 1)  bf16  tap-stacked weights; last column = bias
    # o_ref   : (1, C_out, TL)       f32   output tile
    # xstk_ref: (3*C_in + 1, TL)     bf16  stacked RHS scratch; last row = ones (bias fold)
    d = dilation
    c = c_in
    tl = o_ref.shape[2]

    # LeakyReLU(0.2) applied ONCE per tile; math in f32 (v5e's VPU has no bf16 path and
    # the 32-bit lane rotate below is the best-supported case).
    a = x_ref[0].astype(jnp.float32)
    a = jnp.where(a >= 0, a, 0.2 * a)

    # Tap k of the dilated conv reads the activated input at column t + (k-1)*d.
    # Shifts are circular lane rotations (XLU slot, full-width unmasked stores); only the
    # d boundary lanes are then patched from the pre-activated halo strip.
    xstk_ref[0:c, :] = pltpu.roll(a, d, axis=1).astype(jnp.bfloat16)            # tap 0: x[t-d]
    xstk_ref[0:c, 0:d] = halo_ref[0, 0, :, 0:d]                                  # left halo patch
    xstk_ref[c:2 * c, :] = a.astype(jnp.bfloat16)                                # tap 1: x[t]
    xstk_ref[2 * c:3 * c, :] = pltpu.roll(a, tl - d, axis=1).astype(jnp.bfloat16)  # tap 2: x[t+d]
    xstk_ref[2 * c:3 * c, tl - d:tl] = halo_ref[0, 0, :, d:2 * d]                # right halo patch
    xstk_ref[3 * c:3 * c + 1, :] = jnp.ones((1, tl), dtype=jnp.bfloat16)         # bias row

    # Single fused MXU matmul: (C_out, 3*C_in+1) x (3*C_in+1, TL), bf16 in, f32 accumulate.
    y = jnp.dot(w_ref[...], xstk_ref[...], preferred_element_type=jnp.float32)
    o_ref[0] = y.astype(o_ref.dtype)


def _pick_length_tile(length, c_in, c_out):
    """Largest lane-dense (multiple-of-128) tile fitting a per-step VMEM budget."""
    # Per-lane bytes of one grid step: double-buffered bf16 x + f32 out tiles, bf16 stacked
    # scratch, plus ~3 f32 (C_in, TL) in-kernel temporaries (activation + the two rolls).
    per_lane = 2 * 2 * c_in + 2 * 4 * c_out + 2 * (3 * c_in + 1) + 12 * c_in
    budget = 8 * 2 ** 20   # conservative per-step budget: v7x has only 64 MiB VMEM per TC
    cap = max(128, min(budget // per_lane, 8192) // 128 * 128)
    cands = [t for t in range(128, min(length, cap) + 1, 128) if length % t == 0]
    if cands:
        # Prefer >=2 L-tiles so both v7x TensorCores get work even at batch=1.
        multi = [t for t in cands if length // t >= 2]
        return (max(multi) if multi else max(cands)), False
    # Ragged / short L: pad up to a multiple of 128 in the wrapper, slice back at the end.
    return min(cap, ((length + 127) // 128) * 128), True


def convolution_block(x, weight, bias, dilation):
    """LeakyReLU(0.2) then Conv1d(kernel=3, stride=1, padding=dilation, dilation=dilation).

    x: (B, C_in, L) f32, weight: (C_out, C_in, 3), bias: (C_out,).
    """
    B, C_in, L = x.shape
    C_out, C_in_w, K = weight.shape
    assert K == 3 and C_in_w == C_in
    d = int(dilation)
    assert d >= 1

    TL, ragged = _pick_length_tile(L, C_in, C_out)
    assert d < TL, "kernel assumes dilation < length tile"
    n_l = pl.cdiv(L, TL)
    Lw = n_l * TL
    x_work = jnp.pad(x, ((0, 0), (0, 0), (0, Lw - L))) if ragged else x

    # Packed weights (C_out, 3*C_in+1): W[o, k*C_in+c] = weight[o, c, k]; last column = bias,
    # matched by the all-ones row of the stacked RHS (bias folded into the MXU matmul).
    kk = 3 * C_in + 1
    w_taps = jnp.transpose(weight, (0, 2, 1)).reshape(C_out, 3 * C_in)
    w_packed = jnp.concatenate([w_taps, bias.reshape(C_out, 1)], axis=1).astype(jnp.bfloat16)

    # Merged per-(batch, tile) halo strip [left | right]: (B, n_l, C_in, 2*d) of activated
    # input just outside each tile, zeros outside the sequence (LeakyReLU(0)=0 keeps that
    # consistent with the conv's zero padding).  O(d/TL) of x -> cheap to precompute.
    offs = jnp.concatenate([jnp.arange(-d, 0), jnp.arange(TL, TL + d)])
    cols = jnp.arange(n_l)[:, None] * TL + offs[None, :]                 # (n_l, 2d)
    valid = (cols >= 0) & (cols < Lw)
    g = x_work[:, :, jnp.clip(cols, 0, Lw - 1)]                          # (B, C_in, n_l, 2d)
    halo = jnp.where(valid[None, None], _leaky_relu(g), 0.0)
    halo = halo.transpose(0, 2, 1, 3).astype(jnp.bfloat16)

    # bf16 input halves x HBM traffic and the double-buffered tile VMEM; the matmul already
    # runs in bf16 so precision is effectively unchanged (f32 accumulate, f32 output).
    x_bf = x_work.astype(jnp.bfloat16)

    kernel = functools.partial(_conv_block_kernel, dilation=d, c_in=C_in)

    # VMEM budget: double-buffered x/out/halo/weight blocks + bf16 scratch, with 2x margin
    # for Mosaic internals / vreg spill; capped at 56 MiB so it also fits v7x (64 MiB/TC).
    est = (2 * C_in * TL * 2 + 2 * C_out * TL * 4 + 2 * C_in * 2 * d * 2
           + 2 * C_out * kk * 2 + ((kk + 15) // 16 * 16) * TL * 2 + 3 * C_in * TL * 4)
    vmem_limit = int(min(56 * 2 ** 20, max(8 * 2 ** 20, 2 * est)))

    cost = pl.CostEstimate(
        flops=2 * B * Lw * C_out * kk,
        transcendentals=0,
        bytes_accessed=(x_bf.size * 2 + halo.size * 2 + w_packed.size * 2
                        + B * C_out * Lw * 4),
    )

    out = pl.pallas_call(
        kernel,
        out_shape=jax.ShapeDtypeStruct((B, C_out, Lw), x.dtype),
        grid_spec=pltpu.PrefetchScalarGridSpec(
            num_scalar_prefetch=0,
            grid=(B, n_l),
            in_specs=[
                pl.BlockSpec((1, C_in, TL), lambda b, l: (b, 0, l)),
                pl.BlockSpec((1, 1, C_in, 2 * d), lambda b, l: (b, l, 0, 0)),
                # TODO(synk): for very large C_out*C_in, tile C_out with a third grid axis
                # (or single-buffer the weight) so it is not double-buffered into v7x's
                # 64 MiB VMEM; at these sizes the resident weight is a few KiB.
                pl.BlockSpec((C_out, kk), lambda b, l: (0, 0)),   # VMEM-resident weight+bias
            ],
            out_specs=pl.BlockSpec((1, C_out, TL), lambda b, l: (b, 0, l)),
            scratch_shapes=[pltpu.VMEM((kk, TL), jnp.bfloat16)],
        ),
        compiler_params=pltpu.CompilerParams(
            dimension_semantics=("parallel", "parallel"),
            vmem_limit_bytes=vmem_limit),
        cost_estimate=cost,
    )(x_bf, halo, w_packed)

    return out[:, :, :L] if ragged else out


def _reference(x, weight, bias, dilation):
    # Pure-JAX f32 reference: LeakyReLU(0.2) then dilated conv1d ('same' padding).
    y = jnp.where(x >= 0, x, 0.2 * x)
    out = jax.lax.conv_general_dilated(
        y, weight,
        window_strides=(1,),
        padding=[(dilation, dilation)],
        rhs_dilation=(dilation,),
        dimension_numbers=("NCH", "OIH", "NCH"),
    )
    return out + bias.reshape(1, -1, 1)


if __name__ == "__main__":
    # Small channels, L large enough to exercise multiple lane-dense L tiles + halos.
    B, C_in, C_out, L, dilation = 2, 4, 8, 1024, 2

    key = jax.random.PRNGKey(0)
    kx, kw, kb = jax.random.split(key, 3)
    x = jax.random.normal(kx, (B, C_in, L), dtype=jnp.float32)
    # TODO(synk): PyTorch orthogonal init not reproduced bit-for-bit; deterministic normal
    # weights of matching shape are used instead (init does not affect forward semantics).
    weight = jax.random.normal(kw, (C_out, C_in, 3), dtype=jnp.float32) * 0.1
    bias = jax.random.normal(kb, (C_out,), dtype=jnp.float32) * 0.1

    out = jax.block_until_ready(convolution_block(x, weight, bias, dilation))
    ref = _reference(x, weight, bias, dilation)

    assert out.shape == (B, C_out, L)
    # bf16 inputs / weights with f32 accumulation -> compare against the f32 reference with
    # a tolerance covering bf16 rounding.
    max_err = float(jnp.max(jnp.abs(out - ref)))
    assert jnp.allclose(out, ref, atol=3e-2, rtol=3e-2), max_err

    print("KERNEL_OK")
</pallas_src>

<mosaic_0001>
module attributes {stable_mosaic.version = 11 : i64} {
  func.func @_conv_block_kernel(%arg0: i32, %arg1: i32, %arg2: memref<1x4x512xbf16, #tpu.memory_space<vmem>>, %arg3: memref<1x1x4x4xbf16, #tpu.memory_space<vmem>>, %arg4: memref<8x13xbf16, #tpu.memory_space<vmem>>, %arg5: memref<1x8x512xf32, #tpu.memory_space<vmem>>, %arg6: memref<13x512xbf16, #tpu.memory_space<vmem>>) attributes {dimension_semantics = [#tpu.dimension_semantics<parallel>, #tpu.dimension_semantics<parallel>], iteration_bounds = array<i64: 2, 2>, scalar_prefetch = 0 : i64, scratch_operands = 1 : i64, tpu.core_type = #tpu.core_type<tc>, window_params = [{transform_indices = @transform_0, window_bounds = array<i64: 1, 4, 512>}, {transform_indices = @transform_1, window_bounds = array<i64: 1, 1, 4, 4>}, {pipeline_mode = #tpu.pipeline_mode<synchronous>, transform_indices = @transform_2, window_bounds = array<i64: 8, 13>}, {transform_indices = @transform_3, window_bounds = array<i64: 1, 8, 512>}]} {
    %c0 = arith.constant 0 : index
    %c0_0 = arith.constant 0 : index
    %c0_1 = arith.constant 0 : index
    %0 = vector.load %arg2[%c0, %c0_0, %c0_1] : memref<1x4x512xbf16, #tpu.memory_space<vmem>>, vector<1x4x512xbf16>
    %1 = vector.shape_cast %0 : vector<1x4x512xbf16> to vector<4x512xbf16>
    %2 = arith.extf %1 : vector<4x512xbf16> to vector<4x512xf32>
    %cst = arith.constant 0.000000e+00 : f32
    %3 = vector.broadcast %cst : f32 to vector<4x512xf32>
    %4 = arith.cmpf oge, %2, %3 : vector<4x512xf32>
    %cst_2 = arith.constant 2.000000e-01 : f32
    %5 = vector.broadcast %cst_2 : f32 to vector<4x512xf32>
    %6 = arith.mulf %5, %2 : vector<4x512xf32>
    %7 = arith.select %4, %2, %6 : vector<4x512xi1>, vector<4x512xf32>
    %c2_i32 = arith.constant 2 : i32
    %8 = tpu.dynamic_rotate %7 by %c2_i32 dim 1 : vector<4x512xf32>, i32 -> vector<4x512xf32>
    %9 = arith.truncf %8 : vector<4x512xf32> to vector<4x512xbf16>
    %c0_3 = arith.constant 0 : index
    %c0_4 = arith.constant 0 : index
    %10 = vector.load %arg6[%c0_3, %c0_4] : memref<13x512xbf16, #tpu.memory_space<vmem>>, vector<4x512xbf16>
    tpu.vector_store %arg6[%c0_3, %c0_4], %9 {strides = array<i32>} : memref<13x512xbf16, #tpu.memory_space<vmem>>, vector<4x512xbf16>,
    %c0_5 = arith.constant 0 : index
    %c0_6 = arith.constant 0 : index
    %c0_7 = arith.constant 0 : index
    %c0_8 = arith.constant 0 : index
    %11 = vector.load %arg3[%c0_5, %c0_6, %c0_7, %c0_8] : memref<1x1x4x4xbf16, #tpu.memory_space<vmem>>, vector<1x1x4x2xbf16>
    %12 = vector.shape_cast %11 : vector<1x1x4x2xbf16> to vector<4x2xbf16>
    %c0_9 = arith.constant 0 : index
    %c0_10 = arith.constant 0 : index
    %13 = vector.load %arg6[%c0_9, %c0_10] : memref<13x512xbf16, #tpu.memory_space<vmem>>, vector<4x2xbf16>
    tpu.vector_store %arg6[%c0_9, %c0_10], %12 {strides = array<i32>} : memref<13x512xbf16, #tpu.memory_space<vmem>>, vector<4x2xbf16>,
    %14 = arith.truncf %7 : vector<4x512xf32> to vector<4x512xbf16>
    %c4 = arith.constant 4 : index
    %c0_11 = arith.constant 0 : index
    %15 = vector.load %arg6[%c4, %c0_11] : memref<13x512xbf16, #tpu.memory_space<vmem>>, vector<4x512xbf16>
    tpu.vector_store %arg6[%c4, %c0_11], %14 {strides = array<i32>} : memref<13x512xbf16, #tpu.memory_space<vmem>>, vector<4x512xbf16>,
    %c510_i32 = arith.constant 510 : i32
    %16 = tpu.dynamic_rotate %7 by %c510_i32 dim 1 : vector<4x512xf32>, i32 -> vector<4x512xf32>
    %17 = arith.truncf %16 : vector<4x512xf32> to vector<4x512xbf16>
    %c8 = arith.constant 8 : index
    %c0_12 = arith.constant 0 : index
    %18 = vector.load %arg6[%c8, %c0_12] : memref<13x512xbf16, #tpu.memory_space<vmem>>, vector<4x512xbf16>
    tpu.vector_store %arg6[%c8, %c0_12], %17 {strides = array<i32>} : memref<13x512xbf16, #tpu.memory_space<vmem>>, vector<4x512xbf16>,
    %c0_13 = arith.constant 0 : index
    %c0_14 = arith.constant 0 : index
    %c0_15 = arith.constant 0 : index
    %c2 = arith.constant 2 : index
    %19 = vector.load %arg3[%c0_13, %c0_14, %c0_15, %c2] : memref<1x1x4x4xbf16, #tpu.memory_space<vmem>>, vector<1x1x4x2xbf16>
    %20 = vector.shape_cast %19 : vector<1x1x4x2xbf16> to vector<4x2xbf16>
    %c8_16 = arith.constant 8 : index
    %c510 = arith.constant 510 : index
    %21 = vector.load %arg6[%c8_16, %c510] : memref<13x512xbf16, #tpu.memory_space<vmem>>, vector<4x2xbf16>
    tpu.vector_store %arg6[%c8_16, %c510], %20 {strides = array<i32>} : memref<13x512xbf16, #tpu.memory_space<vmem>>, vector<4x2xbf16>,
    %cst_17 = arith.constant 1.000000e+00 : bf16
    %22 = vector.broadcast %cst_17 : bf16 to vector<1x512xbf16>
    %c12 = arith.constant 12 : index
    %c0_18 = arith.constant 0 : index
    %23 = vector.load %arg6[%c12, %c0_18] : memref<13x512xbf16, #tpu.memory_space<vmem>>, vector<1x512xbf16>
    tpu.vector_store %arg6[%c12, %c0_18], %22 {strides = array<i32>} : memref<13x512xbf16, #tpu.memory_space<vmem>>, vector<1x512xbf16>,
    %c0_19 = arith.constant 0 : index
    %c0_20 = arith.constant 0 : index
    %24 = vector.load %arg4[%c0_19, %c0_20] : memref<8x13xbf16, #tpu.memory_space<vmem>>, vector<8x13xbf16>
    %c0_21 = arith.constant 0 : index
    %c0_22 = arith.constant 0 : index
    %25 = vector.load %arg6[%c0_21, %c0_22] : memref<13x512xbf16, #tpu.memory_space<vmem>>, vector<13x512xbf16>
    %cst_23 = arith.constant dense<0.000000e+00> : vector<8x512xf32>
    %26 = tpu.matmul %24, %25, %cst_23 {dimension_numbers = #tpu.dot_dimension_numbers<[1], [0], [0], [1], [0, 0, 1, 1], [], []>} : vector<8x13xbf16>, vector<13x512xbf16>, vector<8x512xf32> -> vector<8x512xf32>
    %c0_24 = arith.constant 0 : index
    %c0_25 = arith.constant 0 : index
    %c0_26 = arith.constant 0 : index
    %27 = vector.load %arg5[%c0_24, %c0_25, %c0_26] : memref<1x8x512xf32, #tpu.memory_space<vmem>>, vector<1x8x512xf32>
    %28 = vector.shape_cast %27 : vector<1x8x512xf32> to vector<8x512xf32>
    %29 = vector.shape_cast %26 : vector<8x512xf32> to vector<1x8x512xf32>
    tpu.vector_store %arg5[%c0_24, %c0_25, %c0_26], %29 {strides = array<i32>} : memref<1x8x512xf32, #tpu.memory_space<vmem>>, vector<1x8x512xf32>,
    return
  }
  func.func @transform_0(%arg0: i32, %arg1: i32) -> (i32, i32, i32) {
    %c0_i32 = arith.constant 0 : i32
    %c0_i32_0 = arith.constant 0 : i32
    return %arg0, %c0_i32, %arg1 : i32, i32, i32
  }
  func.func @transform_1(%arg0: i32, %arg1: i32) -> (i32, i32, i32, i32) {
    %c0_i32 = arith.constant 0 : i32
    %c0_i32_0 = arith.constant 0 : i32
    %c0_i32_1 = arith.constant 0 : i32
    return %arg0, %arg1, %c0_i32, %c0_i32_0 : i32, i32, i32, i32
  }
  func.func @transform_2(%arg0: i32, %arg1: i32) -> (i32, i32) {
    %c0_i32 = arith.constant 0 : i32
    %c0_i32_0 = arith.constant 0 : i32
    %c0_i32_1 = arith.constant 0 : i32
    return %c0_i32, %c0_i32_0 : i32, i32
  }
  func.func @transform_3(%arg0: i32, %arg1: i32) -> (i32, i32, i32) {
    %c0_i32 = arith.constant 0 : i32
    %c0_i32_0 = arith.constant 0 : i32
    return %arg0, %c0_i32, %arg1 : i32, i32, i32
  }
}

</mosaic_0001>

<llo_original>
// kernel: tpu_custom_call.1
$region0: #{tpu_custom_call.1}
  #allocation0 [shape = 'u32[]', space=smem, size = 0x4, offset = 0x4, fixed_abs, tag = 'smem constant byte address 0x4 - core index']
  #allocation1 [shape = 'u32[72,128]{1,0:T(1,128)}', space=vmem, size = 0x9000, scoped, tag = 'internal scratch']
  #allocation2 [shape = 'bf16[13,512]{1,0:T(8,128)(2,1)}', space=vmem, size = 0x4000, scoped, tag = 'scratch operand']
  %s0 = inlined_call_operand.hbm [shape: bf16[2,4,1024], index: 0, kind: input, shape index: {}]
  %s1 = inlined_call_operand.hbm [shape: bf16[2,2,4,4], index: 1, kind: input, shape index: {}]
  %s2 = inlined_call_operand.hbm [shape: bf16[8,13], index: 2, kind: input, shape index: {}]
  %s3 = inlined_call_operand.hbm [shape: f32[2,8,1024], index: 3, kind: output, shape index: {}]
  %s4 = sld [smem:[#allocation0]]
  $region57: #{tpu_custom_call.1} parent=0
    _
  %s6 = ssub.s32 1, %s4
  %s7 = scalar_select 0, %s6, %s4
  $region1: #{tpu_custom_call.1} parent=0
    #allocation3 [shape = 'u8[8192]{0}', space=vmem, size = 0x2000, scoped, tag = 'input window, operand 0']
    #allocation4 [shape = 's32[2]{0}', space=sflag, size = 0x8, scoped, tag = 'scoped memory for tpu_custom_call.1']
    #allocation5 [shape = 's32[2]{0}', space=sflag, size = 0x8, scoped, tag = 'scoped memory for tpu_custom_call.1']
    #allocation6 [shape = 'u8[2048]{0}', space=vmem, size = 0x800, scoped, tag = 'input window, operand 1']
    #allocation7 [shape = 's32[2]{0}', space=sflag, size = 0x8, scoped, tag = 'scoped memory for tpu_custom_call.1']
    #allocation8 [shape = 'u8[2048]{0}', space=vmem, size = 0x800, scoped, tag = 'input window, operand 2, single buffered']
    #allocation9 [shape = 'u8[32768]{0}', space=vmem, size = 0x8000, scoped, tag = 'output window, operand 0']
    %8 = vsyncpa [#allocation4], 0
    %s9 = scalar_lea.sflag [#allocation4], 1
    %10 = vsyncpa %s9, 0
    %11 = vsyncpa [#allocation7], 0
    %s12 = scalar_lea.sflag [#allocation7], 1
    %13 = vsyncpa %s12, 0
    %14 = vsyncpa [#allocation5], 0
    %s15 = scalar_lea.sflag [#allocation5], 1
    %16 = vsyncpa %s15, 0
    loop: start=0, step=1, limit=6
    $region2: #{tpu_custom_call.1} parent=1 // loop_pre_header
      _
    $region3: #{tpu_custom_call.1} parent=1 // loop_header
      %s18 = sphi 0, %s22
      %p19 = scmp.ge.s32.totalorder %s18, 6
      %s25 = sphi 0, %s37
      %s26 = sphi 0, %s33
      %s27 = sphi 0, %s25
      %s28 = sphi 0, %s26
      %s29 = sphi 0, %s27
      %s30 = sphi 0, %s28
      %s42 = sphi 0, %s44
      %s45 = sphi 0, %s42
      %s46 = sphi 0, %s45
      %s62 = sphi 0, %s46
      %s70 = sphi 0, %s72
      %s73 = sphi 0, %s70
      %s74 = sphi 0, %s73
      %s90 = sphi 0, %s74
      %s94 = sphi 0, %s94
      %s96 = sphi 0, %s94
      %s97 = sphi 0, %s96
      %s111 = sphi 0, %s97
      %s119 = sphi 0, %s121
      %s122 = sphi 0, %s119
      %s123 = sphi 0, %s122
      %s139 = sphi 0, %s123
    $region4: #{tpu_custom_call.1} parent=1 // loop_header_branch
      %21 = sbr.rel (%p19) target = $region8
    $region5: #{tpu_custom_call.1} parent=1 // loop_body
      %s23 = ssub.s32 %s18, 1
      %s24 = ssub.s32 %s18, 2
      %s31 = sadd.s32 1, %s26
      %p32 = scmp.ge.s32.totalorder %s31, 2
      %s33 = scalar_select %p32, 0, %s31
      %s34 = sadd.s32 1, %s25
      %s35 = scalar_select %p32, %s34, %s25
      %p36 = scmp.ge.s32.totalorder %s35, 2
      %s37 = scalar_select %p36, 0, %s35
      %s38 = ssub.s32 %s25, %s37
      %s39 = ssub.s32 %s26, %s33
      %s40 = sor.u32 %s38, %s39
      %p41 = scmp.eq.s32.totalorder %s40, 0
      %s43 = sadd.s32 %s42, 1
      %s44 = scalar_select %p41, %s42, %s43
      %p47 = pneg %p41
      %p48 = scmp.eq.s32.totalorder %s18, 3
      %p49 = por %p47, %p48
      %p50 = scmp.ne.s32.totalorder %s42, %s45
      %p51 = scmp.eq.s32.totalorder %s18, 0
      %p52 = por %p50, %p51
      %p53 = scmp.ne.s32.totalorder %s42, %s45
      %p54 = scmp.eq.s32.totalorder %s23, 3
      %p55 = por %p53, %p54
      %p56 = scmp.ne.s32.totalorder %s45, %s46
      %p57 = scmp.eq.s32.totalorder %s23, 0
      %p58 = por %p56, %p57
      %p59 = scmp.ne.s32.totalorder %s45, %s46
      %p60 = scmp.eq.s32.totalorder %s24, 3
      %p61 = por %p59, %p60
      %p63 = scmp.ne.s32.totalorder %s46, %s62
      %p64 = scmp.eq.s32.totalorder %s24, 0
      %p65 = por %p63, %p64
      %s66 = ssub.s32 %s25, %s37
      %s67 = ssub.s32 %s26, %s33
      %s68 = sor.u32 %s66, %s67
      %p69 = scmp.eq.s32.totalorder %s68, 0
      %s71 = sadd.s32 %s70, 1
      %s72 = scalar_select %p69, %s70, %s71
      %p75 = pneg %p69
      %p76 = scmp.eq.s32.totalorder %s18, 3
      %p77 = por %p75, %p76
      %p78 = scmp.ne.s32.totalorder %s70, %s73
      %p79 = scmp.eq.s32.totalorder %s18, 0
      %p80 = por %p78, %p79
      %p81 = scmp.ne.s32.totalorder %s70, %s73
      %p82 = scmp.eq.s32.totalorder %s23, 3
      %p83 = por %p81, %p82
      %p84 = scmp.ne.s32.totalorder %s73, %s74
      %p85 = scmp.eq.s32.totalorder %s23, 0
      %p86 = por %p84, %p85
      %p87 = scmp.ne.s32.totalorder %s73, %s74
      %p88 = scmp.eq.s32.totalorder %s24, 3
      %p89 = por %p87, %p88
      %p91 = scmp.ne.s32.totalorder %s74, %s90
      %p92 = scmp.eq.s32.totalorder %s24, 0
      %p93 = por %p91, %p92
      %s95 = sadd.s32 %s94, 1
      %p98 = scmp.eq.s32.totalorder %s18, 3
      %p99 = scmp.ne.s32.totalorder %s94, %s96
      %p100 = scmp.eq.s32.totalorder %s18, 0
      %p101 = por %p99, %p100
      %p102 = scmp.ne.s32.totalorder %s94, %s96
      %p103 = scmp.eq.s32.totalorder %s23, 3
      %p104 = por %p102, %p103
      %p105 = scmp.ne.s32.totalorder %s96, %s97
      %p106 = scmp.eq.s32.totalorder %s23, 0
      %p107 = por %p105, %p106
      %p108 = scmp.ne.s32.totalorder %s96, %s97
      %p109 = scmp.eq.s32.totalorder %s24, 3
      %p110 = por %p108, %p109
      %p112 = scmp.ne.s32.totalorder %s97, %s111
      %p113 = scmp.eq.s32.totalorder %s24, 0
      %p114 = por %p112, %p113
      %s115 = ssub.s32 %s25, %s37
      %s116 = ssub.s32 %s26, %s33
      %s117 = sor.u32 %s115, %s116
      %p118 = scmp.eq.s32.totalorder %s117, 0
      %s120 = sadd.s32 %s119, 1
      %s121 = scalar_select %p118, %s119, %s120
      %p124 = pneg %p118
      %p125 = scmp.eq.s32.totalorder %s18, 3
      %p126 = por %p124, %p125
      %p127 = scmp.ne.s32.totalorder %s119, %s122
      %p128 = scmp.eq.s32.totalorder %s18, 0
      %p129 = por %p127, %p128
      %p130 = scmp.ne.s32.totalorder %s119, %s122
      %p131 = scmp.eq.s32.totalorder %s23, 3
      %p132 = por %p130, %p131
      %p133 = scmp.ne.s32.totalorder %s122, %s123
      %p134 = scmp.eq.s32.totalorder %s23, 0
      %p135 = por %p133, %p134
      %p136 = scmp.ne.s32.totalorder %s122, %s123
      %p137 = scmp.eq.s32.totalorder %s24, 3
      %p138 = por %p136, %p137
      %p140 = scmp.ne.s32.totalorder %s123, %s139
      %p141 = scmp.eq.s32.totalorder %s24, 0
      %p142 = por %p140, %p141
      %p143 = scmp.le.s32.totalorder 1, %s18
      %p144 = scmp.lt.s32.totalorder %s18, 5
      %p145 = pnand %p143, %p144
      %p146 = pneg %p145
      // Predicated region
      $region9: #{tpu_custom_call.1} parent=5 // pred_check
        _
      $region10: #{tpu_custom_call.1} parent=5 // pred_check_branch
        %148 = sbr.rel (%p145) target = $region12
      $region11: #{tpu_custom_call.1} parent=5 // pred_region
        %s149 = ssub.s32 %s18, 1
        // Predicated region
        $region13: #{tpu_custom_call.1} parent=11 // pred_check
          %p150 = pneg %p107
        $region14: #{tpu_custom_call.1} parent=11 // pred_check_branch
          %152 = sbr.rel (%p150) target = $region16
        $region15: #{tpu_custom_call.1} parent=11 // pred_region
          %154 = vsyncadd [#allocation7], 0
          %s156 = sshll.u32 %s2, 4
          %s157 = int_to_ptr.hbm [resolvable:$true] %s156
          %s158 = sshll.u32 [#allocation8], 4
          %s159 = int_to_ptr.vmem [resolvable:$true] %s158
          %161 = dma.hbm_to_vmem [thread:$0]  %s157, 64, %s159, [#allocation7]
        $region16: #{tpu_custom_call.1} parent=11 // pred_fallthru
          _
      $region12: #{tpu_custom_call.1} parent=5 // pred_fallthru
        _
      %p162 = scmp.lt.s32.totalorder %s18, 4
      // Predicated region
      $region17: #{tpu_custom_call.1} parent=5 // pred_check
        %p163 = pneg %p162
      $region18: #{tpu_custom_call.1} parent=5 // pred_check_branch
        %165 = sbr.rel (%p163) target = $region20
      $region19: #{tpu_custom_call.1} parent=5 // pred_region
        // Predicated region
        $region21: #{tpu_custom_call.1} parent=19 // pred_check
          %p166 = pneg %p52
        $region22: #{tpu_custom_call.1} parent=19 // pred_check_branch
          %168 = sbr.rel (%p166) target = $region24
        $region23: #{tpu_custom_call.1} parent=19 // pred_region
          %s169 = sand.u32 %s42, 1
          %s170 = scalar_lea.sflag [#allocation4], %s169
          %s171 = sand.u32 %s42, 1
          %s172 = smul.addr %s171, 8
          %s173 = scalar_lea.vmem [#allocation3], %s172
          %s174 = smul.u32 4, %s26
          %176 = vsyncadd %s170, 0
          %s177 = smul.addr %s25, 8
          %s178 = sadd.s32 %s174, %s177
          %s179 = smul.addr %s178, 2
          %s180 = scalar_lea.hbm %s0, %s179
          %s182 = sshll.u32 %s180, 4
          %s183 = int_to_ptr.hbm [resolvable:$true] %s182
          %s184 = sshll.u32 %s173, 4
          %s185 = int_to_ptr.vmem [resolvable:$true] %s184
          %187 = dma.hbm_to_vmem [thread:$0]  %s183, 128, %s185, %s170
        $region24: #{tpu_custom_call.1} parent=19 // pred_fallthru
          _
        // Predicated region
        $region25: #{tpu_custom_call.1} parent=19 // pred_check
          %p188 = pneg %p80
        $region26: #{tpu_custom_call.1} parent=19 // pred_check_branch
          %190 = sbr.rel (%p188) target = $region28
        $region27: #{tpu_custom_call.1} parent=19 // pred_region
          %s191 = sand.u32 %s18, 1
          %s192 = scalar_lea.sflag [#allocation7], %s191
          %s193 = sand.u32 %s70, 1
          %s194 = smul.addr %s193, 2
          %s195 = scalar_lea.vmem [#allocation6], %s194
          %197 = vsyncadd %s192, 0
          %s198 = smul.addr %s25, 2
          %s199 = sadd.s32 %s26, %s198
          %s200 = smul.addr %s199, 2
          %s201 = scalar_lea.hbm %s1, %s200
          %s203 = sshll.u32 %s201, 4
          %s204 = int_to_ptr.hbm [resolvable:$true] %s203
          %s205 = sshll.u32 %s195, 4
          %s206 = int_to_ptr.vmem [resolvable:$true] %s205
          %208 = dma.hbm_to_vmem [thread:$0]  %s204, 32, %s206, %s192
        $region28: #{tpu_custom_call.1} parent=19 // pred_fallthru
          _
      $region20: #{tpu_custom_call.1} parent=5 // pred_fallthru
        _
      %p209 = scmp.le.s32.totalorder 1, %s18
      %p210 = scmp.lt.s32.totalorder %s18, 5
      %p211 = pnand %p209, %p210
      %p212 = pneg %p211
      // Predicated region
      $region29: #{tpu_custom_call.1} parent=5 // pred_check
        _
      $region30: #{tpu_custom_call.1} parent=5 // pred_check_branch
        %214 = sbr.rel (%p211) target = $region32
      $region31: #{tpu_custom_call.1} parent=5 // pred_region
        %s215 = ssub.s32 %s18, 1
        %s216 = sand.u32 %s45, 1
        %s217 = scalar_lea.sflag [#allocation4], %s216
        %s218 = sand.u32 %s45, 1
        %s219 = smul.addr %s218, 8
        %s220 = scalar_lea.vmem [#allocation3], %s219
        // Predicated region
        $region33: #{tpu_custom_call.1} parent=31 // pred_check
          %p221 = pneg %p58
        $region34: #{tpu_custom_call.1} parent=31 // pred_check_branch
          %223 = sbr.rel (%p221) target = $region36
        $region35: #{tpu_custom_call.1} parent=31 // pred_region
          %225 = dma.done %s217, 128
        $region36: #{tpu_custom_call.1} parent=31 // pred_fallthru
          _
        %s226 = sand.u32 %s23, 1
        %s227 = scalar_lea.sflag [#allocation7], %s226
        %s228 = sand.u32 %s73, 1
        %s229 = smul.addr %s228, 2
        %s230 = scalar_lea.vmem [#allocation6], %s229
        // Predicated region
        $region37: #{tpu_custom_call.1} parent=31 // pred_check
          %p231 = pneg %p86
        $region38: #{tpu_custom_call.1} parent=31 // pred_check_branch
          %233 = sbr.rel (%p231) target = $region40
        $region39: #{tpu_custom_call.1} parent=31 // pred_region
          %235 = dma.done %s227, 32
        $region40: #{tpu_custom_call.1} parent=31 // pred_fallthru
          _
        // Predicated region
        $region41: #{tpu_custom_call.1} parent=31 // pred_check
          %p236 = pneg %p107
        $region42: #{tpu_custom_call.1} parent=31 // pred_check_branch
          %238 = sbr.rel (%p236) target = $region44
        $region43: #{tpu_custom_call.1} parent=31 // pred_region
          %240 = dma.done [#allocation7], 64
        $region44: #{tpu_custom_call.1} parent=31 // pred_fallthru
          _
        %s241 = sand.u32 %s45, 1
        %s242 = scalar_lea.sflag [#allocation4], %s241
        %s243 = sand.u32 %s45, 1
        %s244 = smul.addr %s243, 8
        %s245 = scalar_lea.vmem [#allocation3], %s244
        %p246 = pneg %p58
        %p247 = pneg %p55
        %s248 = sand.u32 %s23, 1
        %s249 = scalar_lea.sflag [#allocation7], %s248
        %s250 = sand.u32 %s73, 1
        %s251 = smul.addr %s250, 2
        %s252 = scalar_lea.vmem [#allocation6], %s251
        %p253 = pneg %p86
        %p254 = pneg %p83
        %p255 = pneg %p107
        %p256 = pneg %p104
        %p257 = pneg %p135
        %p258 = pneg %p132
        %s259 = sand.u32 %s122, 1
        %s260 = scalar_lea.sflag [#allocation5], %s259
        %s261 = sand.u32 %s122, 1
        %s262 = smul.addr %s261, 32
        %s263 = scalar_lea.vmem [#allocation9], %s262
        %s264 = smul.u32 4, %s28
        %s265 = smul.u32 4, %s28
        %v268 = vld [vmem:[%s220] sm:$0xff]
        %v269 = vunpack.c.l.bf16 %v268
        %v270 = vunpack.c.h.bf16 %v268
        %vm271 = vcmp.ge.f32.partialorder %v269, 0.0
        %vm272 = vcmp.ge.f32.partialorder %v270, 0.0
        %v273 = vmul.f32 %v269, 0.2
        %v274 = vmul.f32 %v270, 0.2
        %v275 = vsel %vm271, %v269, %v273
        %v276 = vsel %vm272, %v270, %v274
        %279 = vst [vmem:[#allocation1] ss:$2 sm:$0xff] %v275
        %s280 = scalar_lea.vmem [#allocation1], 16
        %281 = vst [vmem:[%s280] ss:$2 sm:$0xff] %v276
        %v282 = vld.sshfl [vmem:[#allocation1] sm:$0xff pattern:$0x75316420]
        %v283 = vld.sshfl [vmem:[#allocation1 + $0x8] sm:$0xff pattern:$0x75316420]
        %v284 = vld.sshfl [vmem:[#allocation1 + $0x10] sm:$0xff pattern:$0x75316420]
        %v285 = vld.sshfl [vmem:[#allocation1 + $0x18] sm:$0xff pattern:$0x75316420]
        %290 = vrot.lane.b32.xlu0 %v282, 2
        %v291 = vpop.permute.xlu0 %290
        %292 = vrot.lane.b32.xlu0 %v283, 2
        %v293 = vpop.permute.xlu0 %292
        %294 = vrot.lane.b32.xlu0 %v284, 2
        %v295 = vpop.permute.xlu0 %294
        %296 = vrot.lane.b32.xlu0 %v285, 2
        %v297 = vpop.permute.xlu0 %296
        %v298 = vlaneseq
        %v299 = vand.u32 %v298, 127
        %vm300 = vcmp.lt.s32.totalorder %v299, 2
        %v301 = vsel %vm300, %v295, %v297
        %v302 = vsel %vm300, %v293, %v295
        %v303 = vsel %vm300, %v291, %v293
        %v304 = vsel %vm300, %v297, %v291
        %v305 = vpack.c.bf16 %v303, %v304
        %v306 = vpack.c.bf16 %v301, %v302
        %307 = vst [vmem:[#allocation2] sm:$0x33] %v305
        %308 = vst [vmem:[#allocation2 + $0x8] sm:$0x33] %v306
        %v309 = vld [vmem:[%s230] sm:$0x3]
        %vm310 = vcmask 9216
        %311 = vst.msk [vmem:[#allocation2] sm:$0x3] %vm310, %v309
        %312 = vst [vmem:[#allocation1] ss:$2 sm:$0xff] %v275
        %s313 = scalar_lea.vmem [#allocation1], 16
        %314 = vst [vmem:[%s313] ss:$2 sm:$0xff] %v276
        %v315 = vld.sshfl [vmem:[#allocation1] sm:$0xff pattern:$0x75316420]
        %v316 = vld.sshfl [vmem:[#allocation1 + $0x8] sm:$0xff pattern:$0x75316420]
        %v317 = vld.sshfl [vmem:[#allocation1 + $0x10] sm:$0xff pattern:$0x75316420]
        %v318 = vld.sshfl [vmem:[#allocation1 + $0x18] sm:$0xff pattern:$0x75316420]
        %v323 = vpack.c.bf16 %v316, %v315
        %v324 = vpack.c.bf16 %v318, %v317
        %v327 = vrot.slane %v323, 6
        %v328 = vrot.slane %v324, 6
        %331 = vst [vmem:[#allocation2] sm:$0xcc] %v327
        %332 = vst [vmem:[#allocation2 + $0x8] sm:$0xcc] %v328
        %333 = vst [vmem:[#allocation1] ss:$2 sm:$0xff] %v275
        %s334 = scalar_lea.vmem [#allocation1], 16
        %335 = vst [vmem:[%s334] ss:$2 sm:$0xff] %v276
        %v336 = vld.sshfl [vmem:[#allocation1] sm:$0xff pattern:$0x75316420]
        %v337 = vld.sshfl [vmem:[#allocation1 + $0x8] sm:$0xff pattern:$0x75316420]
        %v338 = vld.sshfl [vmem:[#allocation1 + $0x10] sm:$0xff pattern:$0x75316420]
        %v339 = vld.sshfl [vmem:[#allocation1 + $0x18] sm:$0xff pattern:$0x75316420]
        %344 = vrot.lane.b32.xlu0 %v336, 126
        %v345 = vpop.permute.xlu0 %344
        %346 = vrot.lane.b32.xlu0 %v337, 126
        %v347 = vpop.permute.xlu0 %346
        %348 = vrot.lane.b32.xlu0 %v338, 126
        %v349 = vpop.permute.xlu0 %348
        %350 = vrot.lane.b32.xlu0 %v339, 126
        %v351 = vpop.permute.xlu0 %350
        %vm352 = vcmp.lt.s32.totalorder %v299, 126
        %v353 = vsel %vm352, %v349, %v351
        %v354 = vsel %vm352, %v347, %v349
        %v355 = vsel %vm352, %v345, %v347
        %v356 = vsel %vm352, %v351, %v345
        %v357 = vpack.c.bf16 %v354, %v355
        %v358 = vpack.c.bf16 %v356, %v353
        %359 = vst [vmem:[#allocation2 + $0x10] sm:$0x33] %v357
        %360 = vst [vmem:[#allocation2 + $0x18] sm:$0x33] %v358
        %v361 = vld [vmem:[%s230] sm:$0x3]
        %363 = vst [vmem:[#allocation1] ss:$2 sm:$0xff] %v361
        %v364 = vld.sshfl [vmem:[#allocation1] sm:$0xff pattern:$0x75643120]
        %366 = vrot.lane.b32.xlu0 %v364, 124
        %v367 = vpop.permute.xlu0 %366
        %vm369 = vcmask 1042416
        %370 = vst.msk [vmem:[#allocation2 + $0x1c] sm:$0x3] %vm369, %v367
        %vm371 = vcmask 1042434
        %vm372 = vsmask.f32 2304
        %vm373 = vmand %vm371, %vm372
        %vm374 = vcmask 1046534
        %vm375 = vsmask.f32 6400
        %vm376 = vmand %vm374, %vm375
        %vm377 = vmor %vm376, %vm373
        %v378 = vld [vmem:[#allocation2 + $0x10] sm:$0x44]
        %v379 = vsel %vm377, 1065369472, %v378
        %380 = vst [vmem:[#allocation2 + $0x10] sm:$0x44] %v379
        %v381 = vld [vmem:[#allocation2 + $0x18] sm:$0x44]
        %v382 = vsel %vm377, 1065369472, %v381
        %383 = vst [vmem:[#allocation2 + $0x18] sm:$0x44] %v382
        %v384 = vld [vmem:[#allocation8] sm:$0xf]
        %v385 = vld [vmem:[#allocation2] sm:$0xff]
        %v386 = vld [vmem:[#allocation2 + $0x8] sm:$0xff]
        %v387 = vld [vmem:[#allocation2 + $0x10] sm:$0x77]
        %v388 = vld [vmem:[#allocation2 + $0x18] sm:$0x77]
        %v393 = vunpack.c.l.b16 %v385
        %v394 = vunpack.c.h.b16 %v385
        %v395 = vunpack.c.l.b16 %v386
        %v396 = vunpack.c.h.b16 %v386
        %v397 = vunpack.c.l.b16 %v387
        %v398 = vunpack.c.h.b16 %v387
        %v399 = vunpack.c.l.b16 %v388
        %v400 = vunpack.c.h.b16 %v388
        %v401 = vpack.c.b16 %v397, %v393
        %v402 = vpack.c.b16 %v398, %v394
        %v403 = vpack.c.b16 %v399, %v395
        %v404 = vpack.c.b16 %v400, %v396
        %vm405 = vcmask 105472
        %v407 = vsel %vm405, %v384, 0
        %vm409 = vcmask 1045504
        %vm410 = vcmask 1046528
        %v411 = vsel %vm409, 4294967295, 65535
        %v412 = vsel %vm410, %v411, 0
        %v414 = vand.u32 %v401, %v412
        %v417 = vand.u32 %v402, %v412
        %v420 = vand.u32 %v403, %v412
        %v423 = vand.u32 %v404, %v412
        %425 = vmatpush.bf16.msra.mxu0 0
        %426 = vmatpush.bf16.msra.mxu0 0
        %427 = vmatpush.bf16.msra.mxu0 0
        %428 = vmatpush.bf16.msra.mxu0 0
        %429 = vmatpush.bf16.msra.mxu0 0
        %430 = vmatpush.bf16.msra.mxu0 0
        %431 = vmatpush.bf16.msra.mxu0 0
        %432 = vmatpush.bf16.msra.mxu0 %v414
        %433 = vmatmul.bf16.gmra.mxu0 %v407
        %v434 = vpop.f32.mrf.mxu0
        %v435 = vadd.f32 0.0, %v434
        %v436 = vpop.f32.mrf.mxu0
        %437 = vdwg.mxu0
        %438 = vmatpush.bf16.msra.mxu0 0
        %439 = vmatpush.bf16.msra.mxu0 0
        %440 = vmatpush.bf16.msra.mxu0 0
        %441 = vmatpush.bf16.msra.mxu0 0
        %442 = vmatpush.bf16.msra.mxu0 0
        %443 = vmatpush.bf16.msra.mxu0 0
        %444 = vmatpush.bf16.msra.mxu0 0
        %445 = vmatpush.bf16.msra.mxu0 %v417
        %446 = vmatmul.bf16.gmra.mxu0 %v407
        %v447 = vpop.f32.mrf.mxu0
        %v448 = vadd.f32 0.0, %v447
        %v449 = vpop.f32.mrf.mxu0
        %450 = vdwg.mxu0
        %451 = vmatpush.bf16.msra.mxu0 0
        %452 = vmatpush.bf16.msra.mxu0 0
        %453 = vmatpush.bf16.msra.mxu0 0
        %454 = vmatpush.bf16.msra.mxu0 0
        %455 = vmatpush.bf16.msra.mxu0 0
        %456 = vmatpush.bf16.msra.mxu0 0
        %457 = vmatpush.bf16.msra.mxu0 0
        %458 = vmatpush.bf16.msra.mxu0 %v420
        %459 = vmatmul.bf16.gmra.mxu0 %v407
        %v460 = vpop.f32.mrf.mxu0
        %v461 = vadd.f32 0.0, %v460
        %v462 = vpop.f32.mrf.mxu0
        %463 = vdwg.mxu0
        %464 = vmatpush.bf16.msra.mxu0 0
        %465 = vmatpush.bf16.msra.mxu0 0
        %466 = vmatpush.bf16.msra.mxu0 0
        %467 = vmatpush.bf16.msra.mxu0 0
        %468 = vmatpush.bf16.msra.mxu0 0
        %469 = vmatpush.bf16.msra.mxu0 0
        %470 = vmatpush.bf16.msra.mxu0 0
        %471 = vmatpush.bf16.msra.mxu0 %v423
        %472 = vmatmul.bf16.gmra.mxu0 %v407
        %v473 = vpop.f32.mrf.mxu0
        %v474 = vadd.f32 0.0, %v473
        %v475 = vpop.f32.mrf.mxu0
        %476 = vdwg.mxu0
        %477 = vst [vmem:[%s263] sm:$0xff] %v435
        %478 = vst [vmem:[%s263 + $0x8] sm:$0xff] %v448
        %479 = vst [vmem:[%s263 + $0x10] sm:$0xff] %v461
        %480 = vst [vmem:[%s263 + $0x18] sm:$0xff] %v474
        %s481 = sand.u32 %s122, 1
        %s482 = scalar_lea.sflag [#allocation5], %s481
        %s483 = sand.u32 %s122, 1
        %s484 = smul.addr %s483, 32
        %s485 = scalar_lea.vmem [#allocation9], %s484
        // Predicated region
        $region45: #{tpu_custom_call.1} parent=31 // pred_check
          %p486 = pneg %p132
        $region46: #{tpu_custom_call.1} parent=31 // pred_check_branch
          %488 = sbr.rel (%p486) target = $region48
        $region47: #{tpu_custom_call.1} parent=31 // pred_region
          %s489 = smul.u32 4, %s28
          %491 = vsyncadd %s482, 0
          %s492 = smul.addr %s27, 8
          %s493 = sadd.s32 %s489, %s492
          %s494 = smul.addr %s493, 8
          %s495 = scalar_lea.hbm %s3, %s494
          %s497 = sshll.u32 %s485, 4
          %s498 = int_to_ptr.vmem [resolvable:$true] %s497
          %s499 = sshll.u32 %s495, 4
          %s500 = int_to_ptr.hbm [resolvable:$true] %s499
          %502 = dma.vmem_to_hbm [thread:$0]  %s498, 512, %s500, %s482
        $region48: #{tpu_custom_call.1} parent=31 // pred_fallthru
          _
      $region32: #{tpu_custom_call.1} parent=5 // pred_fallthru
        _
      %p503 = scmp.le.s32.totalorder 2, %s18
      // Predicated region
      $region49: #{tpu_custom_call.1} parent=5 // pred_check
        %p504 = pneg %p503
      $region50: #{tpu_custom_call.1} parent=5 // pred_check_branch
        %506 = sbr.rel (%p504) target = $region52
      $region51: #{tpu_custom_call.1} parent=5 // pred_region
        %s507 = ssub.s32 %s18, 2
        // Predicated region
        $region53: #{tpu_custom_call.1} parent=51 // pred_check
          %p508 = pneg %p138
        $region54: #{tpu_custom_call.1} parent=51 // pred_check_branch
          %510 = sbr.rel (%p508) target = $region56
        $region55: #{tpu_custom_call.1} parent=51 // pred_region
          %s511 = sand.u32 %s123, 1
          %s512 = scalar_lea.sflag [#allocation5], %s511
          %s513 = sand.u32 %s123, 1
          %s514 = smul.addr %s513, 32
          %s515 = scalar_lea.vmem [#allocation9], %s514
          %517 = dma.done %s512, 512
        $region56: #{tpu_custom_call.1} parent=51 // pred_fallthru
          _
      $region52: #{tpu_custom_call.1} parent=5 // pred_fallthru
        _
    $region6: #{tpu_custom_call.1} parent=1 // loop_footer
      %s22 = sadd.s32 1, %s18
    $region7: #{tpu_custom_call.1} parent=1 // loop_footer_branch
      %17 = sbr.rel target = $region3
    $region8: #{tpu_custom_call.1} parent=1 // loop_exit
      _
    %518 = vsyncpa [#allocation4], 1
    %s519 = scalar_lea.sflag [#allocation4], 1
    %520 = vsyncpa %s519, 1
    %521 = vsyncpa [#allocation7], 1
    %s522 = scalar_lea.sflag [#allocation7], 1
    %523 = vsyncpa %s522, 1
    %524 = vsyncpa [#allocation5], 1
    %s525 = scalar_lea.sflag [#allocation5], 1
    %526 = vsyncpa %s525, 1

</llo_original>
